<compile_context>
chip_gen: v7x
topology: tpu7x:2x2x1
jax: 0.10.0
libtpu: 0.0.40
codegen_flags: <defaults>
</compile_context>

<pallas_src>
import functools
import math

import jax
import jax.numpy as jnp
import numpy as np
from jax.experimental import pallas as pl
from jax.experimental.pallas import tpu as pltpu


def _round_up(v, m):
    return ((v + m - 1) // m) * m


def _padded_bytes(shape, itemsize=4):
    """f32 VMEM footprint of `shape` padded to (8, 128) tiles."""
    shape = (1,) * max(0, 2 - len(shape)) + tuple(shape)
    lead = 1
    for d in shape[:-2]:
        lead *= d
    return itemsize * lead * _round_up(shape[-2], 8) * _round_up(shape[-1], 128)


def _vmem_estimate(S, B, H, TB):
    const = 2 * (_padded_bytes((2 * S, S)) + 2 * _padded_bytes((H, H)))  # 2-buffered
    io = 2 * 2 * _padded_bytes((S, TB * H))                              # x + out blocks
    msk = 2 * _padded_bytes((S, TB, 1))
    interm = (_padded_bytes((2 * S, TB * H)) + 4 * _padded_bytes((2 * S, H))
              + 2 * _padded_bytes((S, H)))
    return const + io + msk + interm + (2 << 20)


def _choose_tb(S, B, H, budget=48 * (1 << 20)):
    """Batch elements per grid step: whole batch if it fits, else 8-aligned tiles."""
    base = 8 * (16 // math.gcd(H, 16))  # ensures TB % 8 == 0 and (TB*H) % 128 == 0
    if B <= 8 or base >= B or _vmem_estimate(S, B, H, B) <= budget:
        return B
    tb = base
    for cand in range(base, min(B, 64) + 1, base):
        if _vmem_estimate(S, B, H, cand) <= budget:
            tb = cand
    return tb


def _dft_cos_sin(n, dtype):
    # Reduce (k*s) mod n in int32 before the trig: float32 k*s loses precision
    # for n >= ~2048, while int32 is exact for any realistic S/H (n < ~46k).
    k = jnp.arange(n, dtype=jnp.int32)
    ks = (k[:, None] * k[None, :]) % jnp.int32(n)
    ang = (2.0 * jnp.pi / n) * ks.astype(jnp.float32)
    return jnp.cos(ang).astype(dtype), jnp.sin(ang).astype(dtype)


def _fnet_kernel(x_ref, cs2_ref, ch_ref, sh_ref, mask_ref, out_ref, *, compute_dtype):
    # x_ref:    (S, TB*H)   batch block, batch folded into the lane dim
    # cs2_ref:  (2S, S)     [[Cs],[Ss]] stacked seq-DFT matrices
    # ch_ref:   (H, H)      hidden-DFT cos matrix (symmetric)
    # sh_ref:   (H, H)      hidden-DFT sin matrix (symmetric)
    # mask_ref: (S, TB, 1)  float, >0.5 means padded -> zero out
    # out_ref:  (S, TB*H)
    S = cs2_ref.shape[1]
    H = ch_ref.shape[0]
    TB = mask_ref.shape[1]

    # Seq-DFT: one lane-dense MXU matmul, M = 2S, N = TB*H.
    a2 = jnp.dot(cs2_ref[...], x_ref[...],
                 preferred_element_type=jnp.float32)            # (2S, TB*H) f32

    ch = ch_ref[...]            # hoisted out of the loop
    sh = sh_ref[...]
    mask = mask_ref[...]        # (S, TB, 1)

    # Hidden-DFT + mask per batch element: plain 2D dots + static slices only
    # (no in-kernel reshapes / relayouts).
    for t in range(TB):
        a_t = a2[:, t * H:(t + 1) * H]                          # (2S, H)
        cos_t = a_t[:S].astype(compute_dtype)                   # (S, H)
        sin_t = a_t[S:].astype(compute_dtype)                   # (S, H)
        real_t = (jnp.dot(cos_t, ch, preferred_element_type=jnp.float32)
                  - jnp.dot(sin_t, sh, preferred_element_type=jnp.float32))
        keep_t = mask[:, t, :] < 0.5                            # (S, 1)
        out_ref[:, t * H:(t + 1) * H] = jnp.where(keep_t, real_t,
                                                  jnp.float32(0.0))


def fourier_transform(x, key_padding_mask, *, compute_dtype=jnp.float32):
    """x: (S, B, H); key_padding_mask: (B, S) bool. Returns (S, B, H) float32."""
    S, B, H = x.shape
    assert key_padding_mask.shape == (B, S)

    TB = _choose_tb(S, B, H)
    grid = (pl.cdiv(B, TB),)

    cs, ss = _dft_cos_sin(S, compute_dtype)
    cs2 = jnp.concatenate([cs, ss], axis=0)                     # (2S, S)
    ch, sh = _dft_cos_sin(H, compute_dtype)

    # Free row-major views -- no transposes of x (mask transpose is tiny).
    x2 = x.astype(compute_dtype).reshape(S, B * H)              # (S, B*H)
    mask3 = key_padding_mask.T.astype(jnp.float32).reshape(S, B, 1)

    vmem_limit = int(min(112 * (1 << 20),
                         max(32 * (1 << 20), 1.5 * _vmem_estimate(S, B, H, TB))))

    out_flat = pl.pallas_call(
        functools.partial(_fnet_kernel, compute_dtype=compute_dtype),
        out_shape=jax.ShapeDtypeStruct((S, B * H), jnp.float32),
        grid=grid,
        in_specs=[
            pl.BlockSpec((S, TB * H), lambda b: (0, b)),        # x batch block
            pl.BlockSpec((2 * S, S), lambda b: (0, 0)),         # CS2 (resident)
            pl.BlockSpec((H, H), lambda b: (0, 0)),             # Ch  (resident)
            pl.BlockSpec((H, H), lambda b: (0, 0)),             # Sh  (resident)
            pl.BlockSpec((S, TB, 1), lambda b: (0, b, 0)),      # padding mask
        ],
        out_specs=pl.BlockSpec((S, TB * H), lambda b: (0, b)),
        compiler_params=pltpu.CompilerParams(
            dimension_semantics=("parallel",),
            vmem_limit_bytes=vmem_limit),
    )(x2, cs2, ch, sh, mask3)

    return out_flat.reshape(S, B, H)                            # free reshape


if __name__ == "__main__":
    S, B, H = 8, 2, 32
    key = jax.random.PRNGKey(0)
    x = jax.random.normal(key, (S, B, H), dtype=jnp.float32)

    # Deterministic padding: batch 0 pads the last 2 positions, batch 1 the last 3.
    lengths = jnp.array([S - 2, S - 3], dtype=jnp.int32)
    key_padding_mask = jnp.arange(S)[None, :] >= lengths[:, None]   # (B, S) bool

    out = jax.block_until_ready(fourier_transform(x, key_padding_mask))

    # Reference: exact PyTorch semantics in plain JAX.
    ref = jnp.real(jnp.fft.fft2(x.astype(jnp.float32), axes=(0, 2)))
    ref = jnp.where(key_padding_mask.T[:, :, None], 0.0, ref)

    np.testing.assert_allclose(np.asarray(out), np.asarray(ref),
                               rtol=1e-4, atol=1e-4)
    print("KERNEL_OK")
</pallas_src>

<mosaic_0001>
module attributes {stable_mosaic.version = 11 : i64} {
  func.func @_fnet_kernel(%arg0: i32, %arg1: memref<8x64xf32, #tpu.memory_space<vmem>>, %arg2: memref<16x8xf32, #tpu.memory_space<vmem>>, %arg3: memref<32x32xf32, #tpu.memory_space<vmem>>, %arg4: memref<32x32xf32, #tpu.memory_space<vmem>>, %arg5: memref<8x2x1xf32, #tpu.memory_space<vmem>>, %arg6: memref<8x64xf32, #tpu.memory_space<vmem>>) attributes {dimension_semantics = [#tpu.dimension_semantics<parallel>], iteration_bounds = array<i64: 1>, scalar_prefetch = 0 : i64, scratch_operands = 0 : i64, tpu.core_type = #tpu.core_type<tc>, window_params = [{transform_indices = @transform_0, window_bounds = array<i64: 8, 64>}, {pipeline_mode = #tpu.pipeline_mode<synchronous>, transform_indices = @transform_1, window_bounds = array<i64: 16, 8>}, {pipeline_mode = #tpu.pipeline_mode<synchronous>, transform_indices = @transform_2, window_bounds = array<i64: 32, 32>}, {pipeline_mode = #tpu.pipeline_mode<synchronous>, transform_indices = @transform_3, window_bounds = array<i64: 32, 32>}, {transform_indices = @transform_4, window_bounds = array<i64: 8, 2, 1>}, {transform_indices = @transform_5, window_bounds = array<i64: 8, 64>}]} {
    %c0 = arith.constant 0 : index
    %c0_0 = arith.constant 0 : index
    %0 = vector.load %arg2[%c0, %c0_0] : memref<16x8xf32, #tpu.memory_space<vmem>>, vector<16x8xf32>
    %c0_1 = arith.constant 0 : index
    %c0_2 = arith.constant 0 : index
    %1 = vector.load %arg1[%c0_1, %c0_2] : memref<8x64xf32, #tpu.memory_space<vmem>>, vector<8x64xf32>
    %cst = arith.constant dense<0.000000e+00> : vector<16x64xf32>
    %2 = tpu.matmul %0, %1, %cst {dimension_numbers = #tpu.dot_dimension_numbers<[1], [0], [0], [1], [0, 0, 1, 1], [], []>} : vector<16x8xf32>, vector<8x64xf32>, vector<16x64xf32> -> vector<16x64xf32>
    %c0_3 = arith.constant 0 : index
    %c0_4 = arith.constant 0 : index
    %3 = vector.load %arg3[%c0_3, %c0_4] : memref<32x32xf32, #tpu.memory_space<vmem>>, vector<32x32xf32>
    %c0_5 = arith.constant 0 : index
    %c0_6 = arith.constant 0 : index
    %4 = vector.load %arg4[%c0_5, %c0_6] : memref<32x32xf32, #tpu.memory_space<vmem>>, vector<32x32xf32>
    %c0_7 = arith.constant 0 : index
    %c0_8 = arith.constant 0 : index
    %c0_9 = arith.constant 0 : index
    %5 = vector.load %arg5[%c0_7, %c0_8, %c0_9] : memref<8x2x1xf32, #tpu.memory_space<vmem>>, vector<8x2x1xf32>
    %6 = vector.extract_strided_slice %2 {offsets = [0, 0], sizes = [16, 32], strides = [1, 1]} : vector<16x64xf32> to vector<16x32xf32>
    %7 = vector.extract_strided_slice %6 {offsets = [0, 0], sizes = [8, 32], strides = [1, 1]} : vector<16x32xf32> to vector<8x32xf32>
    %8 = vector.extract_strided_slice %6 {offsets = [8, 0], sizes = [8, 32], strides = [1, 1]} : vector<16x32xf32> to vector<8x32xf32>
    %cst_10 = arith.constant dense<0.000000e+00> : vector<8x32xf32>
    %9 = tpu.matmul %7, %3, %cst_10 {dimension_numbers = #tpu.dot_dimension_numbers<[1], [0], [0], [1], [0, 0, 1, 1], [], []>} : vector<8x32xf32>, vector<32x32xf32>, vector<8x32xf32> -> vector<8x32xf32>
    %cst_11 = arith.constant dense<0.000000e+00> : vector<8x32xf32>
    %10 = tpu.matmul %8, %4, %cst_11 {dimension_numbers = #tpu.dot_dimension_numbers<[1], [0], [0], [1], [0, 0, 1, 1], [], []>} : vector<8x32xf32>, vector<32x32xf32>, vector<8x32xf32> -> vector<8x32xf32>
    %11 = arith.subf %9, %10 : vector<8x32xf32>
    %12 = vector.extract_strided_slice %5 {offsets = [0, 0, 0], sizes = [8, 1, 1], strides = [1, 1, 1]} : vector<8x2x1xf32> to vector<8x1x1xf32>
    %13 = vector.shape_cast %12 : vector<8x1x1xf32> to vector<8x1xf32>
    %cst_12 = arith.constant 5.000000e-01 : f32
    %14 = vector.broadcast %cst_12 : f32 to vector<8x1xf32>
    %15 = arith.cmpf olt, %13, %14 : vector<8x1xf32>
    %cst_13 = arith.constant 0.000000e+00 : f32
    %16 = vector.shape_cast %15 : vector<8x1xi1> to vector<8x1xi1>
    %17 = vector.broadcast %16 : vector<8x1xi1> to vector<8x32xi1>
    %18 = vector.broadcast %cst_13 : f32 to vector<8x32xf32>
    %19 = arith.select %17, %11, %18 : vector<8x32xi1>, vector<8x32xf32>
    %c0_14 = arith.constant 0 : index
    %c0_15 = arith.constant 0 : index
    %20 = vector.load %arg6[%c0_14, %c0_15] : memref<8x64xf32, #tpu.memory_space<vmem>>, vector<8x32xf32>
    tpu.vector_store %arg6[%c0_14, %c0_15], %19 {strides = array<i32>} : memref<8x64xf32, #tpu.memory_space<vmem>>, vector<8x32xf32>,
    %21 = vector.extract_strided_slice %2 {offsets = [0, 32], sizes = [16, 32], strides = [1, 1]} : vector<16x64xf32> to vector<16x32xf32>
    %22 = vector.extract_strided_slice %21 {offsets = [0, 0], sizes = [8, 32], strides = [1, 1]} : vector<16x32xf32> to vector<8x32xf32>
    %23 = vector.extract_strided_slice %21 {offsets = [8, 0], sizes = [8, 32], strides = [1, 1]} : vector<16x32xf32> to vector<8x32xf32>
    %cst_16 = arith.constant dense<0.000000e+00> : vector<8x32xf32>
    %24 = tpu.matmul %22, %3, %cst_16 {dimension_numbers = #tpu.dot_dimension_numbers<[1], [0], [0], [1], [0, 0, 1, 1], [], []>} : vector<8x32xf32>, vector<32x32xf32>, vector<8x32xf32> -> vector<8x32xf32>
    %cst_17 = arith.constant dense<0.000000e+00> : vector<8x32xf32>
    %25 = tpu.matmul %23, %4, %cst_17 {dimension_numbers = #tpu.dot_dimension_numbers<[1], [0], [0], [1], [0, 0, 1, 1], [], []>} : vector<8x32xf32>, vector<32x32xf32>, vector<8x32xf32> -> vector<8x32xf32>
    %26 = arith.subf %24, %25 : vector<8x32xf32>
    %27 = vector.extract_strided_slice %5 {offsets = [0, 1, 0], sizes = [8, 1, 1], strides = [1, 1, 1]} : vector<8x2x1xf32> to vector<8x1x1xf32>
    %28 = vector.shape_cast %27 : vector<8x1x1xf32> to vector<8x1xf32>
    %cst_18 = arith.constant 5.000000e-01 : f32
    %29 = vector.broadcast %cst_18 : f32 to vector<8x1xf32>
    %30 = arith.cmpf olt, %28, %29 : vector<8x1xf32>
    %cst_19 = arith.constant 0.000000e+00 : f32
    %31 = vector.shape_cast %30 : vector<8x1xi1> to vector<8x1xi1>
    %32 = vector.broadcast %31 : vector<8x1xi1> to vector<8x32xi1>
    %33 = vector.broadcast %cst_19 : f32 to vector<8x32xf32>
    %34 = arith.select %32, %26, %33 : vector<8x32xi1>, vector<8x32xf32>
    %c0_20 = arith.constant 0 : index
    %c32 = arith.constant 32 : index
    %35 = vector.load %arg6[%c0_20, %c32] : memref<8x64xf32, #tpu.memory_space<vmem>>, vector<8x32xf32>
    tpu.vector_store %arg6[%c0_20, %c32], %34 {strides = array<i32>} : memref<8x64xf32, #tpu.memory_space<vmem>>, vector<8x32xf32>,
    return
  }
  func.func @transform_0(%arg0: i32) -> (i32, i32) {
    %c0_i32 = arith.constant 0 : i32
    %c0_i32_0 = arith.constant 0 : i32
    return %c0_i32, %arg0 : i32, i32
  }
  func.func @transform_1(%arg0: i32) -> (i32, i32) {
    %c0_i32 = arith.constant 0 : i32
    %c0_i32_0 = arith.constant 0 : i32
    %c0_i32_1 = arith.constant 0 : i32
    return %c0_i32, %c0_i32_0 : i32, i32
  }
  func.func @transform_2(%arg0: i32) -> (i32, i32) {
    %c0_i32 = arith.constant 0 : i32
    %c0_i32_0 = arith.constant 0 : i32
    %c0_i32_1 = arith.constant 0 : i32
    return %c0_i32, %c0_i32_0 : i32, i32
  }
  func.func @transform_3(%arg0: i32) -> (i32, i32) {
    %c0_i32 = arith.constant 0 : i32
    %c0_i32_0 = arith.constant 0 : i32
    %c0_i32_1 = arith.constant 0 : i32
    return %c0_i32, %c0_i32_0 : i32, i32
  }
  func.func @transform_4(%arg0: i32) -> (i32, i32, i32) {
    %c0_i32 = arith.constant 0 : i32
    %c0_i32_0 = arith.constant 0 : i32
    %c0_i32_1 = arith.constant 0 : i32
    return %c0_i32, %arg0, %c0_i32_0 : i32, i32, i32
  }
  func.func @transform_5(%arg0: i32) -> (i32, i32) {
    %c0_i32 = arith.constant 0 : i32
    %c0_i32_0 = arith.constant 0 : i32
    return %c0_i32, %arg0 : i32, i32
  }
}

</mosaic_0001>

<llo_original>
// kernel: tpu_custom_call.1
$region0: #{tpu_custom_call.1}
  #allocation0 [shape = 'u32[]', space=smem, size = 0x4, offset = 0x4, fixed_abs, tag = 'smem constant byte address 0x4 - core index']
  #allocation1 [shape = 'u32[144,128]{1,0:T(1,128)}', space=vmem, size = 0x12000, scoped, tag = 'internal scratch']
  %s0 = inlined_call_operand.vmem [shape: f32[8,64], index: 0, kind: input, shape index: {}]
  %s1 = inlined_call_operand.vmem [shape: f32[16,8], index: 1, kind: input, shape index: {}]
  %s2 = inlined_call_operand.vmem [shape: f32[32,32], index: 2, kind: input, shape index: {}]
  %s3 = inlined_call_operand.hbm [shape: f32[32,32], index: 3, kind: input, shape index: {}]
  %s4 = inlined_call_operand.vmem [shape: f32[8,2,1], index: 4, kind: input, shape index: {}]
  %s5 = inlined_call_operand.hbm [shape: f32[8,64], index: 5, kind: output, shape index: {}]
  %s6 = sld [smem:[#allocation0]]
  $region34: #{tpu_custom_call.1} parent=0
    _
  %s8 = ssub.s32 1, %s6
  %s9 = scalar_select 0, %s8, %s6
  $region1: #{tpu_custom_call.1} parent=0
    #allocation2 [shape = 'u8[16384]{0}', space=vmem, size = 0x4000, scoped, tag = 'input window, operand 3, single buffered']
    #allocation3 [shape = 's32[1]{0}', space=sflag, size = 0x4, scoped, tag = 'scoped memory for tpu_custom_call.1']
    #allocation4 [shape = 's32[1]{0}', space=sflag, size = 0x4, scoped, tag = 'scoped memory for tpu_custom_call.1']
    #allocation5 [shape = 'u8[4096]{0}', space=vmem, size = 0x1000, scoped, tag = 'output window, operand 0, single buffered']
    %10 = vsyncpa [#allocation3], 0
    %11 = vsyncpa [#allocation4], 0
    // Predicated region
    $region2: #{tpu_custom_call.1} parent=1 // pred_check
      _
    $region3: #{tpu_custom_call.1} parent=1 // pred_check_branch
      %13 = sbr.rel (0) target = $region5
    $region4: #{tpu_custom_call.1} parent=1 // pred_region
      _
    $region5: #{tpu_custom_call.1} parent=1 // pred_fallthru
      _
    // Predicated region
    $region6: #{tpu_custom_call.1} parent=1 // pred_check
      _
    $region7: #{tpu_custom_call.1} parent=1 // pred_check_branch
      %15 = sbr.rel (0) target = $region9
    $region8: #{tpu_custom_call.1} parent=1 // pred_region
      _
    $region9: #{tpu_custom_call.1} parent=1 // pred_fallthru
      _
    // Predicated region
    $region10: #{tpu_custom_call.1} parent=1 // pred_check
      _
    $region11: #{tpu_custom_call.1} parent=1 // pred_check_branch
      %17 = sbr.rel (0) target = $region13
    $region12: #{tpu_custom_call.1} parent=1 // pred_region
      _
    $region13: #{tpu_custom_call.1} parent=1 // pred_fallthru
      _
    // Predicated region
    $region14: #{tpu_custom_call.1} parent=1 // pred_check
      _
    $region15: #{tpu_custom_call.1} parent=1 // pred_check_branch
      %19 = sbr.rel (0) target = $region17
    $region16: #{tpu_custom_call.1} parent=1 // pred_region
      %s21 = ssub.s32 512, 512
      %22 = vsyncadd [#allocation3], %s21
      %s23 = sshll.u32 [#allocation2], 4
      %s24 = int_to_ptr.vmem [resolvable:$true] %s23
      %29 = dma.hbm_to_vmem [thread:$0]  %s3, 512, %s24, [#allocation3], 128, 128, 8
    $region17: #{tpu_custom_call.1} parent=1 // pred_fallthru
      _
    // Predicated region
    $region18: #{tpu_custom_call.1} parent=1 // pred_check
      _
    $region19: #{tpu_custom_call.1} parent=1 // pred_check_branch
      %31 = sbr.rel (0) target = $region21
    $region20: #{tpu_custom_call.1} parent=1 // pred_region
      _
    $region21: #{tpu_custom_call.1} parent=1 // pred_fallthru
      _
    // Predicated region
    $region22: #{tpu_custom_call.1} parent=1 // pred_check
      _
    $region23: #{tpu_custom_call.1} parent=1 // pred_check_branch
      %33 = sbr.rel (0) target = $region25
    $region24: #{tpu_custom_call.1} parent=1 // pred_region
      %34 = dma.done [#allocation3], 512
    $region25: #{tpu_custom_call.1} parent=1 // pred_fallthru
      _
    %v35 = vld [vmem:[%s1] sm:$0xff]
    %v36 = vld [vmem:[%s1 + $0x8] sm:$0xff]
    %v37 = vld [vmem:[%s0] sm:$0xff]
    %vm38 = vcmask 64512
    %v40 = vsel %vm38, %v35, 0
    %v43 = vsel %vm38, %v36, 0
    %45 = vmatprep.subr.mxu0 0.0
    %46 = vmatpush1.msra.mxu0 %v37
    %47 = vmatprep.subr.mxu0 0.0
    %48 = vmatpush1.msra.mxu0 0.0
    %49 = vmatprep.subr.mxu0 0.0
    %50 = vmatpush1.msra.mxu0 0.0
    %51 = vmatprep.subr.mxu0 0.0
    %52 = vmatpush1.msra.mxu0 0.0
    %53 = vmatprep.subr.mxu0 0.0
    %54 = vmatpush1.msra.mxu0 0.0
    %55 = vmatprep.subr.mxu0 0.0
    %56 = vmatpush1.msra.mxu0 0.0
    %57 = vmatprep.subr.mxu0 0.0
    %58 = vmatpush1.msra.mxu0 0.0
    %59 = vmatprep.subr.mxu0 0.0
    %60 = vmatpush1.msra.mxu0 0.0
    %61 = vmatprep.subr.mxu0 0.0
    %62 = vmatpush1.msra.mxu0 0.0
    %63 = vmatprep.subr.mxu0 0.0
    %64 = vmatpush1.msra.mxu0 0.0
    %65 = vmatprep.subr.mxu0 0.0
    %66 = vmatpush1.msra.mxu0 0.0
    %67 = vmatprep.subr.mxu0 0.0
    %68 = vmatpush1.msra.mxu0 0.0
    %69 = vmatprep.subr.mxu0 0.0
    %70 = vmatpush1.msra.mxu0 0.0
    %71 = vmatprep.subr.mxu0 0.0
    %72 = vmatpush1.msra.mxu0 0.0
    %73 = vmatprep.subr.mxu0 0.0
    %74 = vmatpush1.msra.mxu0 0.0
    %75 = vmatprep.subr.mxu0 0.0
    %76 = vmatpush1.msra.mxu0 0.0
    %77 = vmatprep.subr.mxu0 0.0
    %78 = vmatpush1.msra.mxu0 0.0
    %79 = vmatprep.subr.mxu0 0.0
    %80 = vmatpush1.msra.mxu0 0.0
    %81 = vmatprep.subr.mxu0 0.0
    %82 = vmatpush1.msra.mxu0 0.0
    %83 = vmatprep.subr.mxu0 0.0
    %84 = vmatpush1.msra.mxu0 0.0
    %85 = vmatprep.subr.mxu0 0.0
    %86 = vmatpush1.msra.mxu0 0.0
    %87 = vmatprep.subr.mxu0 0.0
    %88 = vmatpush1.msra.mxu0 0.0
    %89 = vmatprep.subr.mxu0 0.0
    %90 = vmatpush1.msra.mxu0 0.0
    %91 = vmatprep.subr.mxu0 0.0
    %92 = vmatpush1.msra.mxu0 0.0
    %93 = vmatprep.subr.mxu0 0.0
    %94 = vmatpush1.msra.mxu0 0.0
    %95 = vmatprep.subr.mxu0 0.0
    %96 = vmatpush1.msra.mxu0 0.0
    %97 = vmatprep.subr.mxu0 0.0
    %98 = vmatpush1.msra.mxu0 0.0
    %99 = vmatprep.subr.mxu0 0.0
    %100 = vmatpush1.msra.mxu0 0.0
    %101 = vmatprep.subr.mxu0 0.0
    %102 = vmatpush1.msra.mxu0 0.0
    %103 = vmatprep.subr.mxu0 0.0
    %104 = vmatpush1.msra.mxu0 0.0
    %105 = vmatprep.subr.mxu0 0.0
    %106 = vmatpush1.msra.mxu0 0.0
    %107 = vmatprep.subr.mxu0 0.0
    %108 = vmatpush1.msra.mxu0 0.0
    %109 = vmatprep.mubr.f32.mxu0 0.0
    %110 = vmatmul.mubr.f32.gmra.mrb[0].mxu0 %v40
    %v111 = vpop.f32.mrb[0].mxu0
    %v112 = vadd.f32 0.0, %v111
    %v113 = vpop.f32.mrb[0].mxu0
    %114 = vmatprep.mubr.f32.mxu0 0.0
    %115 = vmatmul.mubr.f32.gmra.mrb[0].mxu0 %v43
    %v116 = vpop.f32.mrb[0].mxu0
    %v117 = vadd.f32 0.0, %v116
    %v118 = vpop.f32.mrb[0].mxu0
    %119 = vdwg.mxu0
    %v120 = vld [vmem:[%s2] sm:$0xff]
    %v121 = vld [vmem:[%s2 + $0x8] sm:$0xff]
    %v122 = vld [vmem:[%s2 + $0x10] sm:$0xff]
    %v123 = vld [vmem:[%s2 + $0x18] sm:$0xff]
    %v124 = vld [vmem:[#allocation2] sm:$0xff]
    %v125 = vld [vmem:[#allocation2 + $0x8] sm:$0xff]
    %v126 = vld [vmem:[#allocation2 + $0x10] sm:$0xff]
    %v127 = vld [vmem:[#allocation2 + $0x18] sm:$0xff]
    %v128 = vld [vmem:[%s4] sm:$0x3]
    %v129 = vld [vmem:[%s4 + $0x2] sm:$0x3]
    %v130 = vld [vmem:[%s4 + $0x4] sm:$0x3]
    %v131 = vld [vmem:[%s4 + $0x6] sm:$0x3]
    %v132 = vld [vmem:[%s4 + $0x8] sm:$0x3]
    %v133 = vld [vmem:[%s4 + $0xa] sm:$0x3]
    %v134 = vld [vmem:[%s4 + $0xc] sm:$0x3]
    %v135 = vld [vmem:[%s4 + $0xe] sm:$0x3]
    %vm136 = vcmask 261120
    %v138 = vsel %vm136, %v112, 0
    %140 = vmatprep.subr.mxu0 0.0
    %141 = vmatpush1.msra.mxu0 %v120
    %142 = vmatprep.subr.mxu0 0.0
    %143 = vmatpush1.msra.mxu0 %v121
    %144 = vmatprep.subr.mxu0 0.0
    %145 = vmatpush1.msra.mxu0 %v122
    %146 = vmatprep.subr.mxu0 0.0
    %147 = vmatpush1.msra.mxu0 %v123
    %148 = vmatprep.subr.mxu0 0.0
    %149 = vmatpush1.msra.mxu0 0.0
    %150 = vmatprep.subr.mxu0 0.0
    %151 = vmatpush1.msra.mxu0 0.0
    %152 = vmatprep.subr.mxu0 0.0
    %153 = vmatpush1.msra.mxu0 0.0
    %154 = vmatprep.subr.mxu0 0.0
    %155 = vmatpush1.msra.mxu0 0.0
    %156 = vmatprep.subr.mxu0 0.0
    %157 = vmatpush1.msra.mxu0 0.0
    %158 = vmatprep.subr.mxu0 0.0
    %159 = vmatpush1.msra.mxu0 0.0
    %160 = vmatprep.subr.mxu0 0.0
    %161 = vmatpush1.msra.mxu0 0.0
    %162 = vmatprep.subr.mxu0 0.0
    %163 = vmatpush1.msra.mxu0 0.0
    %164 = vmatprep.subr.mxu0 0.0
    %165 = vmatpush1.msra.mxu0 0.0
    %166 = vmatprep.subr.mxu0 0.0
    %167 = vmatpush1.msra.mxu0 0.0
    %168 = vmatprep.subr.mxu0 0.0
    %169 = vmatpush1.msra.mxu0 0.0
    %170 = vmatprep.subr.mxu0 0.0
    %171 = vmatpush1.msra.mxu0 0.0
    %172 = vmatprep.subr.mxu0 0.0
    %173 = vmatpush1.msra.mxu0 0.0
    %174 = vmatprep.subr.mxu0 0.0
    %175 = vmatpush1.msra.mxu0 0.0
    %176 = vmatprep.subr.mxu0 0.0
    %177 = vmatpush1.msra.mxu0 0.0
    %178 = vmatprep.subr.mxu0 0.0
    %179 = vmatpush1.msra.mxu0 0.0
    %180 = vmatprep.subr.mxu0 0.0
    %181 = vmatpush1.msra.mxu0 0.0
    %182 = vmatprep.subr.mxu0 0.0
    %183 = vmatpush1.msra.mxu0 0.0
    %184 = vmatprep.subr.mxu0 0.0
    %185 = vmatpush1.msra.mxu0 0.0
    %186 = vmatprep.subr.mxu0 0.0
    %187 = vmatpush1.msra.mxu0 0.0
    %188 = vmatprep.subr.mxu0 0.0
    %189 = vmatpush1.msra.mxu0 0.0
    %190 = vmatprep.subr.mxu0 0.0
    %191 = vmatpush1.msra.mxu0 0.0
    %192 = vmatprep.subr.mxu0 0.0
    %193 = vmatpush1.msra.mxu0 0.0
    %194 = vmatprep.subr.mxu0 0.0
    %195 = vmatpush1.msra.mxu0 0.0
    %196 = vmatprep.subr.mxu0 0.0
    %197 = vmatpush1.msra.mxu0 0.0
    %198 = vmatprep.subr.mxu0 0.0
    %199 = vmatpush1.msra.mxu0 0.0
    %200 = vmatprep.subr.mxu0 0.0
    %201 = vmatpush1.msra.mxu0 0.0
    %202 = vmatprep.subr.mxu0 0.0
    %203 = vmatpush1.msra.mxu0 0.0
    %204 = vmatprep.mubr.f32.mxu0 0.0
    %205 = vmatmul.mubr.f32.gmra.mrb[0].mxu0 %v138
    %v206 = vpop.f32.mrb[0].mxu0
    %v207 = vadd.f32 0.0, %v206
    %v208 = vpop.f32.mrb[0].mxu0
    %209 = vdwg.mxu0
    %v211 = vsel %vm136, %v117, 0
    %213 = vmatprep.subr.mxu0 0.0
    %214 = vmatpush1.msra.mxu0 %v124
    %215 = vmatprep.subr.mxu0 0.0
    %216 = vmatpush1.msra.mxu0 %v125
    %217 = vmatprep.subr.mxu0 0.0
    %218 = vmatpush1.msra.mxu0 %v126
    %219 = vmatprep.subr.mxu0 0.0
    %220 = vmatpush1.msra.mxu0 %v127
    %221 = vmatprep.subr.mxu0 0.0
    %222 = vmatpush1.msra.mxu0 0.0
    %223 = vmatprep.subr.mxu0 0.0
    %224 = vmatpush1.msra.mxu0 0.0
    %225 = vmatprep.subr.mxu0 0.0
    %226 = vmatpush1.msra.mxu0 0.0
    %227 = vmatprep.subr.mxu0 0.0
    %228 = vmatpush1.msra.mxu0 0.0
    %229 = vmatprep.subr.mxu0 0.0
    %230 = vmatpush1.msra.mxu0 0.0
    %231 = vmatprep.subr.mxu0 0.0
    %232 = vmatpush1.msra.mxu0 0.0
    %233 = vmatprep.subr.mxu0 0.0
    %234 = vmatpush1.msra.mxu0 0.0
    %235 = vmatprep.subr.mxu0 0.0
    %236 = vmatpush1.msra.mxu0 0.0
    %237 = vmatprep.subr.mxu0 0.0
    %238 = vmatpush1.msra.mxu0 0.0
    %239 = vmatprep.subr.mxu0 0.0
    %240 = vmatpush1.msra.mxu0 0.0
    %241 = vmatprep.subr.mxu0 0.0
    %242 = vmatpush1.msra.mxu0 0.0
    %243 = vmatprep.subr.mxu0 0.0
    %244 = vmatpush1.msra.mxu0 0.0
    %245 = vmatprep.subr.mxu0 0.0
    %246 = vmatpush1.msra.mxu0 0.0
    %247 = vmatprep.subr.mxu0 0.0
    %248 = vmatpush1.msra.mxu0 0.0
    %249 = vmatprep.subr.mxu0 0.0
    %250 = vmatpush1.msra.mxu0 0.0
    %251 = vmatprep.subr.mxu0 0.0
    %252 = vmatpush1.msra.mxu0 0.0
    %253 = vmatprep.subr.mxu0 0.0
    %254 = vmatpush1.msra.mxu0 0.0
    %255 = vmatprep.subr.mxu0 0.0
    %256 = vmatpush1.msra.mxu0 0.0
    %257 = vmatprep.subr.mxu0 0.0
    %258 = vmatpush1.msra.mxu0 0.0
    %259 = vmatprep.subr.mxu0 0.0
    %260 = vmatpush1.msra.mxu0 0.0
    %261 = vmatprep.subr.mxu0 0.0
    %262 = vmatpush1.msra.mxu0 0.0
    %263 = vmatprep.subr.mxu0 0.0
    %264 = vmatpush1.msra.mxu0 0.0
    %265 = vmatprep.subr.mxu0 0.0
    %266 = vmatpush1.msra.mxu0 0.0
    %267 = vmatprep.subr.mxu0 0.0
    %268 = vmatpush1.msra.mxu0 0.0
    %269 = vmatprep.subr.mxu0 0.0
    %270 = vmatpush1.msra.mxu0 0.0
    %271 = vmatprep.subr.mxu0 0.0
    %272 = vmatpush1.msra.mxu0 0.0
    %273 = vmatprep.subr.mxu0 0.0
    %274 = vmatpush1.msra.mxu0 0.0
    %275 = vmatprep.subr.mxu0 0.0
    %276 = vmatpush1.msra.mxu0 0.0
    %277 = vmatprep.mubr.f32.mxu0 0.0
    %278 = vmatmul.mubr.f32.gmra.mrb[0].mxu0 %v211
    %v279 = vpop.f32.mrb[0].mxu0
    %v280 = vadd.f32 0.0, %v279
    %v281 = vpop.f32.mrb[0].mxu0
    %282 = vdwg.mxu0
    %v283 = vsub.f32 %v207, %v280
    %vm284 = vcmp.lt.f32.partialorder %v128, 0.5
    %vm285 = vcmp.lt.f32.partialorder %v129, 0.5
    %vm286 = vcmp.lt.f32.partialorder %v130, 0.5
    %vm287 = vcmp.lt.f32.partialorder %v131, 0.5
    %vm288 = vcmp.lt.f32.partialorder %v132, 0.5
    %vm289 = vcmp.lt.f32.partialorder %v133, 0.5
    %vm290 = vcmp.lt.f32.partialorder %v134, 0.5
    %vm291 = vcmp.lt.f32.partialorder %v135, 0.5
    %v292 = vsel %vm284, 1, 0
    %v293 = vsel %vm285, 1, 0
    %v294 = vsel %vm286, 1, 0
    %v295 = vsel %vm287, 1, 0
    %v296 = vsel %vm288, 1, 0
    %v297 = vsel %vm289, 1, 0
    %v298 = vsel %vm290, 1, 0
    %v299 = vsel %vm291, 1, 0
    %300 = vset.pattern.permute.xlu0 0
    %301 = vperm.xlu0 %300, %v292
    %v302 = vpop.permute.xlu0 %301
    %303 = vset.pattern.permute.xlu0 0
    %304 = vperm.xlu0 %303, %v293
    %v305 = vpop.permute.xlu0 %304
    %306 = vset.pattern.permute.xlu0 0
    %307 = vperm.xlu0 %306, %v294
    %v308 = vpop.permute.xlu0 %307
    %309 = vset.pattern.permute.xlu0 0
    %310 = vperm.xlu0 %309, %v295
    %v311 = vpop.permute.xlu0 %310
    %312 = vset.pattern.permute.xlu0 0
    %313 = vperm.xlu0 %312, %v296
    %v314 = vpop.permute.xlu0 %313
    %315 = vset.pattern.permute.xlu0 0
    %316 = vperm.xlu0 %315, %v297
    %v317 = vpop.permute.xlu0 %316
    %318 = vset.pattern.permute.xlu0 0
    %319 = vperm.xlu0 %318, %v298
    %v320 = vpop.permute.xlu0 %319
    %321 = vset.pattern.permute.xlu0 0
    %322 = vperm.xlu0 %321, %v299
    %v323 = vpop.permute.xlu0 %322
    %vm324 = vcmp.eq.s32.totalorder %v302, 1
    %vm325 = vcmp.eq.s32.totalorder %v305, 1
    %vm326 = vcmp.eq.s32.totalorder %v308, 1
    %vm327 = vcmp.eq.s32.totalorder %v311, 1
    %vm328 = vcmp.eq.s32.totalorder %v314, 1
    %vm329 = vcmp.eq.s32.totalorder %v317, 1
    %vm330 = vcmp.eq.s32.totalorder %v320, 1
    %vm331 = vcmp.eq.s32.totalorder %v323, 1
    %v333 = vrot.slane %v283, 1
    %v334 = vrot.slane %v283, 2
    %v335 = vrot.slane %v283, 3
    %v336 = vrot.slane %v283, 4
    %v337 = vrot.slane %v283, 5
    %v338 = vrot.slane %v283, 6
    %v339 = vrot.slane %v283, 7
    %v348 = vsel %vm324, %v283, 0.0
    %v349 = vsel %vm325, %v333, 0.0
    %v350 = vsel %vm326, %v334, 0.0
    %v351 = vsel %vm327, %v335, 0.0
    %v352 = vsel %vm328, %v336, 0.0
    %v353 = vsel %vm329, %v337, 0.0
    %v354 = vsel %vm330, %v338, 0.0
    %v355 = vsel %vm331, %v339, 0.0
    %v364 = vrot.slane %v349, 7
    %vm365 = vcmask 1041409
    %v366 = vsel %vm365, %v364, %v348
    %v367 = vrot.slane %v350, 6
    %vm368 = vcmask 1042434
    %v369 = vsel %vm368, %v367, %v366
    %v370 = vrot.slane %v351, 5
    %vm371 = vcmask 1043459
    %v372 = vsel %vm371, %v370, %v369
    %v373 = vrot.slane %v352, 4
    %vm374 = vcmask 1044484
    %v375 = vsel %vm374, %v373, %v372
    %v376 = vrot.slane %v353, 3
    %vm377 = vcmask 1045509
    %v378 = vsel %vm377, %v376, %v375
    %v379 = vrot.slane %v354, 2
    %vm380 = vcmask 1046534
    %v381 = vsel %vm380, %v379, %v378
    %v382 = vrot.slane %v355, 1
    %vm383 = vcmask 1047559
    %v384 = vsel %vm383, %v382, %v381
    %386 = vst.msk [vmem:[#allocation5] sm:$0xff] %vm136, %v384
    %387 = vrot.lane.b32.xlu0 %v112, 96
    %v388 = vpop.permute.xlu0 %387
    %v389 = vsel %vm136, %v388, 0
    %391 = vmatprep.subr.mxu0 0.0
    %392 = vmatpush1.msra.mxu0 %v120
    %393 = vmatprep.subr.mxu0 0.0
    %394 = vmatpush1.msra.mxu0 %v121
    %395 = vmatprep.subr.mxu0 0.0
    %396 = vmatpush1.msra.mxu0 %v122
    %397 = vmatprep.subr.mxu0 0.0
    %398 = vmatpush1.msra.mxu0 %v123
    %399 = vmatprep.subr.mxu0 0.0
    %400 = vmatpush1.msra.mxu0 0.0
    %401 = vmatprep.subr.mxu0 0.0
    %402 = vmatpush1.msra.mxu0 0.0
    %403 = vmatprep.subr.mxu0 0.0
    %404 = vmatpush1.msra.mxu0 0.0
    %405 = vmatprep.subr.mxu0 0.0
    %406 = vmatpush1.msra.mxu0 0.0
    %407 = vmatprep.subr.mxu0 0.0
    %408 = vmatpush1.msra.mxu0 0.0
    %409 = vmatprep.subr.mxu0 0.0
    %410 = vmatpush1.msra.mxu0 0.0
    %411 = vmatprep.subr.mxu0 0.0
    %412 = vmatpush1.msra.mxu0 0.0
    %413 = vmatprep.subr.mxu0 0.0
    %414 = vmatpush1.msra.mxu0 0.0
    %415 = vmatprep.subr.mxu0 0.0
    %416 = vmatpush1.msra.mxu0 0.0
    %417 = vmatprep.subr.mxu0 0.0
    %418 = vmatpush1.msra.mxu0 0.0
    %419 = vmatprep.subr.mxu0 0.0
    %420 = vmatpush1.msra.mxu0 0.0
    %421 = vmatprep.subr.mxu0 0.0
    %422 = vmatpush1.msra.mxu0 0.0
    %423 = vmatprep.subr.mxu0 0.0
    %424 = vmatpush1.msra.mxu0 0.0
    %425 = vmatprep.subr.mxu0 0.0
    %426 = vmatpush1.msra.mxu0 0.0
    %427 = vmatprep.subr.mxu0 0.0
    %428 = vmatpush1.msra.mxu0 0.0
    %429 = vmatprep.subr.mxu0 0.0
    %430 = vmatpush1.msra.mxu0 0.0
    %431 = vmatprep.subr.mxu0 0.0
    %432 = vmatpush1.msra.mxu0 0.0
    %433 = vmatprep.subr.mxu0 0.0
    %434 = vmatpush1.msra.mxu0 0.0
    %435 = vmatprep.subr.mxu0 0.0
    %436 = vmatpush1.msra.mxu0 0.0
    %437 = vmatprep.subr.mxu0 0.0
    %438 = vmatpush1.msra.mxu0 0.0
    %439 = vmatprep.subr.mxu0 0.0
    %440 = vmatpush1.msra.mxu0 0.0
    %441 = vmatprep.subr.mxu0 0.0
    %442 = vmatpush1.msra.mxu0 0.0
    %443 = vmatprep.subr.mxu0 0.0
    %444 = vmatpush1.msra.mxu0 0.0
    %445 = vmatprep.subr.mxu0 0.0
    %446 = vmatpush1.msra.mxu0 0.0
    %447 = vmatprep.subr.mxu0 0.0
    %448 = vmatpush1.msra.mxu0 0.0
    %449 = vmatprep.subr.mxu0 0.0
    %450 = vmatpush1.msra.mxu0 0.0
    %451 = vmatprep.subr.mxu0 0.0
    %452 = vmatpush1.msra.mxu0 0.0
    %453 = vmatprep.subr.mxu0 0.0
    %454 = vmatpush1.msra.mxu0 0.0
    %455 = vmatprep.mubr.f32.mxu0 0.0
    %456 = vmatmul.mubr.f32.gmra.mrb[0].mxu0 %v389
    %v457 = vpop.f32.mrb[0].mxu0
    %v458 = vadd.f32 0.0, %v457
    %v459 = vpop.f32.mrb[0].mxu0
    %460 = vdwg.mxu0
    %461 = vrot.lane.b32.xlu0 %v117, 96
    %v462 = vpop.permute.xlu0 %461
    %v463 = vsel %vm136, %v462, 0
    %465 = vmatprep.subr.mxu0 0.0
    %466 = vmatpush1.msra.mxu0 %v124
    %467 = vmatprep.subr.mxu0 0.0
    %468 = vmatpush1.msra.mxu0 %v125
    %469 = vmatprep.subr.mxu0 0.0
    %470 = vmatpush1.msra.mxu0 %v126
    %471 = vmatprep.subr.mxu0 0.0
    %472 = vmatpush1.msra.mxu0 %v127
    %473 = vmatprep.subr.mxu0 0.0
    %474 = vmatpush1.msra.mxu0 0.0
    %475 = vmatprep.subr.mxu0 0.0
    %476 = vmatpush1.msra.mxu0 0.0
    %477 = vmatprep.subr.mxu0 0.0
    %478 = vmatpush1.msra.mxu0 0.0
    %479 = vmatprep.subr.mxu0 0.0
    %480 = vmatpush1.msra.mxu0 0.0
    %481 = vmatprep.subr.mxu0 0.0
    %482 = vmatpush1.msra.mxu0 0.0
    %483 = vmatprep.subr.mxu0 0.0
    %484 = vmatpush1.msra.mxu0 0.0
    %485 = vmatprep.subr.mxu0 0.0
    %486 = vmatpush1.msra.mxu0 0.0
    %487 = vmatprep.subr.mxu0 0.0
    %488 = vmatpush1.msra.mxu0 0.0
    %489 = vmatprep.subr.mxu0 0.0
    %490 = vmatpush1.msra.mxu0 0.0
    %491 = vmatprep.subr.mxu0 0.0
    %492 = vmatpush1.msra.mxu0 0.0
    %493 = vmatprep.subr.mxu0 0.0
    %494 = vmatpush1.msra.mxu0 0.0
    %495 = vmatprep.subr.mxu0 0.0
    %496 = vmatpush1.msra.mxu0 0.0
    %497 = vmatprep.subr.mxu0 0.0
    %498 = vmatpush1.msra.mxu0 0.0
    %499 = vmatprep.subr.mxu0 0.0
    %500 = vmatpush1.msra.mxu0 0.0
    %501 = vmatprep.subr.mxu0 0.0
    %502 = vmatpush1.msra.mxu0 0.0
    %503 = vmatprep.subr.mxu0 0.0
    %504 = vmatpush1.msra.mxu0 0.0
    %505 = vmatprep.subr.mxu0 0.0
    %506 = vmatpush1.msra.mxu0 0.0
    %507 = vmatprep.subr.mxu0 0.0
    %508 = vmatpush1.msra.mxu0 0.0
    %509 = vmatprep.subr.mxu0 0.0
    %510 = vmatpush1.msra.mxu0 0.0
    %511 = vmatprep.subr.mxu0 0.0
    %512 = vmatpush1.msra.mxu0 0.0
    %513 = vmatprep.subr.mxu0 0.0
    %514 = vmatpush1.msra.mxu0 0.0
    %515 = vmatprep.subr.mxu0 0.0
    %516 = vmatpush1.msra.mxu0 0.0
    %517 = vmatprep.subr.mxu0 0.0
    %518 = vmatpush1.msra.mxu0 0.0
    %519 = vmatprep.subr.mxu0 0.0
    %520 = vmatpush1.msra.mxu0 0.0
    %521 = vmatprep.subr.mxu0 0.0
    %522 = vmatpush1.msra.mxu0 0.0
    %523 = vmatprep.subr.mxu0 0.0
    %524 = vmatpush1.msra.mxu0 0.0
    %525 = vmatprep.subr.mxu0 0.0
    %526 = vmatpush1.msra.mxu0 0.0
    %527 = vmatprep.subr.mxu0 0.0
    %528 = vmatpush1.msra.mxu0 0.0
    %529 = vmatprep.mubr.f32.mxu0 0.0
    %530 = vmatmul.mubr.f32.gmra.mrb[0].mxu0 %v463
    %v531 = vpop.f32.mrb[0].mxu0
    %v532 = vadd.f32 0.0, %v531
    %v533 = vpop.f32.mrb[0].mxu0
    %534 = vdwg.mxu0
    %v535 = vsub.f32 %v458, %v532
    %v537 = vrot.slane %v535, 7
    %v538 = vrot.slane %v535, 1
    %v539 = vrot.slane %v535, 2
    %v540 = vrot.slane %v535, 3
    %v541 = vrot.slane %v535, 4
    %v542 = vrot.slane %v535, 5
    %v543 = vrot.slane %v535, 6
    %v552 = vsel %vm324, %v537, 0.0
    %v553 = vsel %vm325, %v535, 0.0
    %v554 = vsel %vm326, %v538, 0.0
    %v555 = vsel %vm327, %v539, 0.0
    %v556 = vsel %vm328, %v540, 0.0
    %v557 = vsel %vm329, %v541, 0.0
    %v558 = vsel %vm330, %v542, 0.0
    %v559 = vsel %vm331, %v543, 0.0
    %v568 = vrot.slane %v553, 7
    %v569 = vsel %vm368, %v568, %v552
    %v570 = vrot.slane %v554, 6
    %v571 = vsel %vm371, %v570, %v569
    %v572 = vrot.slane %v555, 5
    %v573 = vsel %vm374, %v572, %v571
    %v574 = vrot.slane %v556, 4
    %v575 = vsel %vm377, %v574, %v573
    %v576 = vrot.slane %v557, 3
    %v577 = vsel %vm380, %v576, %v575
    %v578 = vrot.slane %v558, 2
    %v579 = vsel %vm383, %v578, %v577
    %v580 = vrot.slane %v559, 1
    %581 = vrot.lane.b32.xlu0 %v579, 32
    %v582 = vpop.permute.xlu0 %581
    %583 = vrot.lane.b32.xlu0 %v580, 32
    %v584 = vpop.permute.xlu0 %583
    %vm587 = vcmask 523521
    %588 = vst.msk [vmem:[#allocation5 - $0x1] sm:$0xfe] %vm587, %v582
    %vm589 = vcmask 516352
    %590 = vst.msk [vmem:[#allocation5 + $0x7] sm:$0x1] %vm589, %v584
    // Predicated region
    $region26: #{tpu_custom_call.1} parent=1 // pred_check
      _
    $region27: #{tpu_custom_call.1} parent=1 // pred_check_branch
      %592 = sbr.rel (0) target = $region29
    $region28: #{tpu_custom_call.1} parent=1 // pred_region
      %s594 = ssub.s32 128, 128
      %595 = vsyncadd [#allocation4], %s594
      %s597 = sshll.u32 [#allocation5], 4
      %s598 = int_to_ptr.vmem [resolvable:$true] %s597
      %600 = dma.vmem_to_hbm [thread:$0]  %s598, 128, %s5, [#allocation4]
    $region29: #{tpu_custom_call.1} parent=1 // pred_fallthru
      _
    // Predicated region
    $region30: #{tpu_custom_call.1} parent=1 // pred_check
      _
    $region31: #{tpu_custom_call.1} parent=1 // pred_check_branch
      %602 = sbr.rel (0) target = $region33
    $region32: #{tpu_custom_call.1} parent=1 // pred_region
      %603 = dma.done [#allocation4], 128
    $region33: #{tpu_custom_call.1} parent=1 // pred_fallthru
      _
    %604 = vsyncpa [#allocation3], 1
    %605 = vsyncpa [#allocation4], 1

</llo_original>
